<compile_context>
chip_gen: v7x
topology: tpu7x:2x2x1
jax: 0.10.0
libtpu: 0.0.40
codegen_flags: <defaults>
</compile_context>

<pallas_src>
import jax
import jax.numpy as jnp
from jax.experimental import pallas as pl
from jax.experimental.pallas import tpu as pltpu


def _fused_double_conv_relu_kernel(w_ref, b_ref, x_ref, o_ref, pad_ref):
    """One grid step = TB batch images, both conv3x3+ReLU stages fused.

    w_ref   : SMEM (18,)          conv1 weights (first 9) then conv2 weights
    b_ref   : SMEM (2,)           conv1 bias, conv2 bias
    x_ref   : VMEM (TB, H, W)     unpadded input block
    o_ref   : VMEM (TB, H, W)     final output block
    pad_ref : VMEM (TB, H+2, W+2) zero-padded working tile (scratch)
    """
    tb, h, w = x_ref.shape

    # In-kernel zero padding: clear the scratch, then fill its interior.
    pad_ref[...] = jnp.zeros_like(pad_ref)
    pad_ref[:, 1:h + 1, 1:w + 1] = x_ref[...]

    def conv3x3_relu(w_off, b_idx):
        # Bias folded into the accumulator init (saves one full-tile VPU add).
        acc = jnp.full((tb, h, w), b_ref[b_idx], jnp.float32)
        # 3x3 conv as 9 shifted-window MACs over the padded tile; the static
        # di/dj shifts lower to cheap sublane/lane shifts (XLU slot), the
        # multiply-adds stay on the VPU.
        for di in range(3):
            for dj in range(3):
                acc = acc + w_ref[w_off + di * 3 + dj] * \
                    pad_ref[:, di:di + h, dj:dj + w]
        return jnp.maximum(acc, 0.0)

    # conv1 + ReLU written back into the scratch interior (the border stays
    # zero), so conv2 reads an already zero-padded intermediate from VMEM.
    pad_ref[:, 1:h + 1, 1:w + 1] = conv3x3_relu(0, 0)
    # conv2 + ReLU -> only the final result ever touches HBM.
    o_ref[...] = conv3x3_relu(9, 1)


def _choose_tiling(n):
    """Pick (TB, num_blocks) for the batch grid.

    Large TB amortizes the fixed per-grid-step overhead; keep at least 2 steps
    so the 'parallel' axis can be sharded across v7x's two TensorCores, and
    cap TB so the per-step VMEM footprint stays trivially small.
    """
    if n <= 1:
        return 1, 1
    max_tb = 512  # 512 * (18*18 + 2*256) * 4 B  ~= 1.6 MiB per step
    num_blocks = max(2, pl.cdiv(n, max_tb))
    tb = pl.cdiv(n, num_blocks)
    return tb, pl.cdiv(n, tb)


def fused_double_conv_relu(x_nhw, w1, b1, w2, b2):
    """x_nhw: (N, H, W) f32, w*: (3, 3) f32, b*: (1,) f32 -> (N, H, W) f32."""
    n, h, w = x_nhw.shape
    tb, num_blocks = _choose_tiling(n)
    n_pad = tb * num_blocks
    if n_pad != n:  # pad the batch dim only; sliced off after the call
        x_nhw = jnp.pad(x_nhw, ((0, n_pad - n), (0, 0), (0, 0)))

    # Flattened 1-D SMEM params (2-D (3,3) SMEM would pad to an (8,128) slab).
    w_flat = jnp.concatenate([w1.reshape(-1), w2.reshape(-1)]).astype(jnp.float32)
    b_flat = jnp.concatenate([b1.reshape(-1), b2.reshape(-1)]).astype(jnp.float32)

    out = pl.pallas_call(
        _fused_double_conv_relu_kernel,
        out_shape=jax.ShapeDtypeStruct((n_pad, h, w), jnp.float32),
        grid_spec=pltpu.PrefetchScalarGridSpec(
            num_scalar_prefetch=0,
            grid=(num_blocks,),
            in_specs=[
                pl.BlockSpec(memory_space=pltpu.MemorySpace.SMEM),   # weights
                pl.BlockSpec(memory_space=pltpu.MemorySpace.SMEM),   # biases
                pl.BlockSpec((tb, h, w), lambda i: (i, 0, 0)),       # x block
            ],
            out_specs=pl.BlockSpec((tb, h, w), lambda i: (i, 0, 0)),
            scratch_shapes=[pltpu.VMEM((tb, h + 2, w + 2), jnp.float32)],
        ),
        compiler_params=pltpu.CompilerParams(
            dimension_semantics=("parallel",)),
    )(w_flat, b_flat, x_nhw)
    return out[:n]


def neural_network_forward(x_nchw, params):
    """Replicates NeuralNetwork.forward: relu(conv2(relu(conv1(x))))."""
    (w1, b1), (w2, b2) = params
    n, c, h, w = x_nchw.shape
    assert c == 1, "NeuralNetwork uses Conv2d(1, 1, 3): single channel"
    y = fused_double_conv_relu(x_nchw[:, 0, :, :], w1, b1, w2, b2)
    return y[:, None, :, :]  # back to NCHW (N, 1, H, W)


def init_params():
    """Deterministic init matching Conv2d(1, 1, 3) parameter shapes.

    PyTorch Conv2d weight shape is (1, 1, 3, 3); we keep the squeezed (3, 3)
    form plus a (1,) bias, U(-1/sqrt(9), 1/sqrt(9)) like PyTorch's default.
    """
    key = jax.random.PRNGKey(42)
    k1, k2, k3, k4 = jax.random.split(key, 4)
    bound = 1.0 / jnp.sqrt(9.0)
    w1 = jax.random.uniform(k1, (3, 3), jnp.float32, -bound, bound)
    b1 = jax.random.uniform(k2, (1,), jnp.float32, -bound, bound)
    w2 = jax.random.uniform(k3, (3, 3), jnp.float32, -bound, bound)
    b2 = jax.random.uniform(k4, (1,), jnp.float32, -bound, bound)
    return (w1, b1), (w2, b2)


if __name__ == "__main__":
    # NOTE: the PyTorch source as written is buggy (it applies F.relu to the
    # module objects and never uses self.flatten); we implement the clearly
    # intended forward pass: x -> relu(conv1(x)) -> relu(conv2(.)).
    H, W = 16, 16
    params = init_params()
    x = jax.random.normal(jax.random.PRNGKey(0), (2, 1, H, W), jnp.float32)

    fwd = jax.jit(neural_network_forward)
    out = jax.block_until_ready(fwd(x, params))

    # Sanity check against a pure-JAX reference of the same math.
    def ref_conv_relu(xnhw, wt, bs):
        n, h, wd = xnhw.shape
        xp = jnp.pad(xnhw, ((0, 0), (1, 1), (1, 1)))
        acc = jnp.full((n, h, wd), bs[0], jnp.float32)
        for di in range(3):
            for dj in range(3):
                acc = acc + wt[di, dj] * xp[:, di:di + h, dj:dj + wd]
        return jnp.maximum(acc, 0.0)

    (w1, b1), (w2, b2) = params
    ref = ref_conv_relu(ref_conv_relu(x[:, 0], w1, b1), w2, b2)[:, None]
    assert out.shape == (2, 1, H, W)
    assert jnp.allclose(out, ref, atol=1e-5, rtol=1e-5), "mismatch vs reference"

    print("KERNEL_OK")
</pallas_src>

<mosaic_0001>
module attributes {stable_mosaic.version = 11 : i64} {
  func.func @_fused_double_conv_relu_kernel(%arg0: i32, %arg1: memref<18xf32, #tpu.memory_space<smem>>, %arg2: memref<2xf32, #tpu.memory_space<smem>>, %arg3: memref<1x16x16xf32, #tpu.memory_space<vmem>>, %arg4: memref<1x16x16xf32, #tpu.memory_space<vmem>>, %arg5: memref<1x18x18xf32, #tpu.memory_space<vmem>>) attributes {dimension_semantics = [#tpu.dimension_semantics<parallel>], iteration_bounds = array<i64: 2>, scalar_prefetch = 0 : i64, scratch_operands = 1 : i64, tpu.core_type = #tpu.core_type<tc>, window_params = [{transform_indices = @transform_0, window_bounds = array<i64: 18>}, {transform_indices = @transform_1, window_bounds = array<i64: 2>}, {transform_indices = @transform_2, window_bounds = array<i64: 1, 16, 16>}, {transform_indices = @transform_3, window_bounds = array<i64: 1, 16, 16>}]} {
    %cst = arith.constant 0.000000e+00 : f32
    %0 = vector.broadcast %cst : f32 to vector<1x18x18xf32>
    %c0 = arith.constant 0 : index
    %c0_0 = arith.constant 0 : index
    %c0_1 = arith.constant 0 : index
    %1 = vector.load %arg5[%c0, %c0_0, %c0_1] : memref<1x18x18xf32, #tpu.memory_space<vmem>>, vector<1x18x18xf32>
    tpu.vector_store %arg5[%c0, %c0_0, %c0_1], %0 {strides = array<i32>} : memref<1x18x18xf32, #tpu.memory_space<vmem>>, vector<1x18x18xf32>,
    %c0_2 = arith.constant 0 : index
    %c0_3 = arith.constant 0 : index
    %c0_4 = arith.constant 0 : index
    %2 = vector.load %arg3[%c0_2, %c0_3, %c0_4] : memref<1x16x16xf32, #tpu.memory_space<vmem>>, vector<1x16x16xf32>
    %c0_5 = arith.constant 0 : index
    %c1 = arith.constant 1 : index
    %c1_6 = arith.constant 1 : index
    %3 = vector.load %arg5[%c0_5, %c1, %c1_6] : memref<1x18x18xf32, #tpu.memory_space<vmem>>, vector<1x16x16xf32>
    tpu.vector_store %arg5[%c0_5, %c1, %c1_6], %2 {strides = array<i32>} : memref<1x18x18xf32, #tpu.memory_space<vmem>>, vector<1x16x16xf32>,
    %c0_7 = arith.constant 0 : index
    %4 = memref.load %arg2[%c0_7] : memref<2xf32, #tpu.memory_space<smem>>
    %5 = vector.broadcast %4 : f32 to vector<1x16x16xf32>
    %c0_8 = arith.constant 0 : index
    %6 = memref.load %arg1[%c0_8] : memref<18xf32, #tpu.memory_space<smem>>
    %c0_9 = arith.constant 0 : index
    %c0_10 = arith.constant 0 : index
    %c0_11 = arith.constant 0 : index
    %7 = vector.load %arg5[%c0_9, %c0_10, %c0_11] : memref<1x18x18xf32, #tpu.memory_space<vmem>>, vector<1x16x16xf32>
    %8 = vector.broadcast %6 : f32 to vector<1x16x16xf32>
    %9 = arith.mulf %8, %7 : vector<1x16x16xf32>
    %10 = arith.addf %5, %9 : vector<1x16x16xf32>
    %c1_12 = arith.constant 1 : index
    %11 = memref.load %arg1[%c1_12] : memref<18xf32, #tpu.memory_space<smem>>
    %c0_13 = arith.constant 0 : index
    %c0_14 = arith.constant 0 : index
    %c1_15 = arith.constant 1 : index
    %12 = vector.load %arg5[%c0_13, %c0_14, %c1_15] : memref<1x18x18xf32, #tpu.memory_space<vmem>>, vector<1x16x16xf32>
    %13 = vector.broadcast %11 : f32 to vector<1x16x16xf32>
    %14 = arith.mulf %13, %12 : vector<1x16x16xf32>
    %15 = arith.addf %10, %14 : vector<1x16x16xf32>
    %c2 = arith.constant 2 : index
    %16 = memref.load %arg1[%c2] : memref<18xf32, #tpu.memory_space<smem>>
    %c0_16 = arith.constant 0 : index
    %c0_17 = arith.constant 0 : index
    %c2_18 = arith.constant 2 : index
    %17 = vector.load %arg5[%c0_16, %c0_17, %c2_18] : memref<1x18x18xf32, #tpu.memory_space<vmem>>, vector<1x16x16xf32>
    %18 = vector.broadcast %16 : f32 to vector<1x16x16xf32>
    %19 = arith.mulf %18, %17 : vector<1x16x16xf32>
    %20 = arith.addf %15, %19 : vector<1x16x16xf32>
    %c3 = arith.constant 3 : index
    %21 = memref.load %arg1[%c3] : memref<18xf32, #tpu.memory_space<smem>>
    %c0_19 = arith.constant 0 : index
    %c1_20 = arith.constant 1 : index
    %c0_21 = arith.constant 0 : index
    %22 = vector.load %arg5[%c0_19, %c1_20, %c0_21] : memref<1x18x18xf32, #tpu.memory_space<vmem>>, vector<1x16x16xf32>
    %23 = vector.broadcast %21 : f32 to vector<1x16x16xf32>
    %24 = arith.mulf %23, %22 : vector<1x16x16xf32>
    %25 = arith.addf %20, %24 : vector<1x16x16xf32>
    %c4 = arith.constant 4 : index
    %26 = memref.load %arg1[%c4] : memref<18xf32, #tpu.memory_space<smem>>
    %c0_22 = arith.constant 0 : index
    %c1_23 = arith.constant 1 : index
    %c1_24 = arith.constant 1 : index
    %27 = vector.load %arg5[%c0_22, %c1_23, %c1_24] : memref<1x18x18xf32, #tpu.memory_space<vmem>>, vector<1x16x16xf32>
    %28 = vector.broadcast %26 : f32 to vector<1x16x16xf32>
    %29 = arith.mulf %28, %27 : vector<1x16x16xf32>
    %30 = arith.addf %25, %29 : vector<1x16x16xf32>
    %c5 = arith.constant 5 : index
    %31 = memref.load %arg1[%c5] : memref<18xf32, #tpu.memory_space<smem>>
    %c0_25 = arith.constant 0 : index
    %c1_26 = arith.constant 1 : index
    %c2_27 = arith.constant 2 : index
    %32 = vector.load %arg5[%c0_25, %c1_26, %c2_27] : memref<1x18x18xf32, #tpu.memory_space<vmem>>, vector<1x16x16xf32>
    %33 = vector.broadcast %31 : f32 to vector<1x16x16xf32>
    %34 = arith.mulf %33, %32 : vector<1x16x16xf32>
    %35 = arith.addf %30, %34 : vector<1x16x16xf32>
    %c6 = arith.constant 6 : index
    %36 = memref.load %arg1[%c6] : memref<18xf32, #tpu.memory_space<smem>>
    %c0_28 = arith.constant 0 : index
    %c2_29 = arith.constant 2 : index
    %c0_30 = arith.constant 0 : index
    %37 = vector.load %arg5[%c0_28, %c2_29, %c0_30] : memref<1x18x18xf32, #tpu.memory_space<vmem>>, vector<1x16x16xf32>
    %38 = vector.broadcast %36 : f32 to vector<1x16x16xf32>
    %39 = arith.mulf %38, %37 : vector<1x16x16xf32>
    %40 = arith.addf %35, %39 : vector<1x16x16xf32>
    %c7 = arith.constant 7 : index
    %41 = memref.load %arg1[%c7] : memref<18xf32, #tpu.memory_space<smem>>
    %c0_31 = arith.constant 0 : index
    %c2_32 = arith.constant 2 : index
    %c1_33 = arith.constant 1 : index
    %42 = vector.load %arg5[%c0_31, %c2_32, %c1_33] : memref<1x18x18xf32, #tpu.memory_space<vmem>>, vector<1x16x16xf32>
    %43 = vector.broadcast %41 : f32 to vector<1x16x16xf32>
    %44 = arith.mulf %43, %42 : vector<1x16x16xf32>
    %45 = arith.addf %40, %44 : vector<1x16x16xf32>
    %c8 = arith.constant 8 : index
    %46 = memref.load %arg1[%c8] : memref<18xf32, #tpu.memory_space<smem>>
    %c0_34 = arith.constant 0 : index
    %c2_35 = arith.constant 2 : index
    %c2_36 = arith.constant 2 : index
    %47 = vector.load %arg5[%c0_34, %c2_35, %c2_36] : memref<1x18x18xf32, #tpu.memory_space<vmem>>, vector<1x16x16xf32>
    %48 = vector.broadcast %46 : f32 to vector<1x16x16xf32>
    %49 = arith.mulf %48, %47 : vector<1x16x16xf32>
    %50 = arith.addf %45, %49 : vector<1x16x16xf32>
    %cst_37 = arith.constant 0.000000e+00 : f32
    %51 = vector.broadcast %cst_37 : f32 to vector<1x16x16xf32>
    %52 = arith.maximumf %50, %51 : vector<1x16x16xf32>
    %c0_38 = arith.constant 0 : index
    %c1_39 = arith.constant 1 : index
    %c1_40 = arith.constant 1 : index
    %53 = vector.load %arg5[%c0_38, %c1_39, %c1_40] : memref<1x18x18xf32, #tpu.memory_space<vmem>>, vector<1x16x16xf32>
    tpu.vector_store %arg5[%c0_38, %c1_39, %c1_40], %52 {strides = array<i32>} : memref<1x18x18xf32, #tpu.memory_space<vmem>>, vector<1x16x16xf32>,
    %c1_41 = arith.constant 1 : index
    %54 = memref.load %arg2[%c1_41] : memref<2xf32, #tpu.memory_space<smem>>
    %55 = vector.broadcast %54 : f32 to vector<1x16x16xf32>
    %c9 = arith.constant 9 : index
    %56 = memref.load %arg1[%c9] : memref<18xf32, #tpu.memory_space<smem>>
    %c0_42 = arith.constant 0 : index
    %c0_43 = arith.constant 0 : index
    %c0_44 = arith.constant 0 : index
    %57 = vector.load %arg5[%c0_42, %c0_43, %c0_44] : memref<1x18x18xf32, #tpu.memory_space<vmem>>, vector<1x16x16xf32>
    %58 = vector.broadcast %56 : f32 to vector<1x16x16xf32>
    %59 = arith.mulf %58, %57 : vector<1x16x16xf32>
    %60 = arith.addf %55, %59 : vector<1x16x16xf32>
    %c10 = arith.constant 10 : index
    %61 = memref.load %arg1[%c10] : memref<18xf32, #tpu.memory_space<smem>>
    %c0_45 = arith.constant 0 : index
    %c0_46 = arith.constant 0 : index
    %c1_47 = arith.constant 1 : index
    %62 = vector.load %arg5[%c0_45, %c0_46, %c1_47] : memref<1x18x18xf32, #tpu.memory_space<vmem>>, vector<1x16x16xf32>
    %63 = vector.broadcast %61 : f32 to vector<1x16x16xf32>
    %64 = arith.mulf %63, %62 : vector<1x16x16xf32>
    %65 = arith.addf %60, %64 : vector<1x16x16xf32>
    %c11 = arith.constant 11 : index
    %66 = memref.load %arg1[%c11] : memref<18xf32, #tpu.memory_space<smem>>
    %c0_48 = arith.constant 0 : index
    %c0_49 = arith.constant 0 : index
    %c2_50 = arith.constant 2 : index
    %67 = vector.load %arg5[%c0_48, %c0_49, %c2_50] : memref<1x18x18xf32, #tpu.memory_space<vmem>>, vector<1x16x16xf32>
    %68 = vector.broadcast %66 : f32 to vector<1x16x16xf32>
    %69 = arith.mulf %68, %67 : vector<1x16x16xf32>
    %70 = arith.addf %65, %69 : vector<1x16x16xf32>
    %c12 = arith.constant 12 : index
    %71 = memref.load %arg1[%c12] : memref<18xf32, #tpu.memory_space<smem>>
    %c0_51 = arith.constant 0 : index
    %c1_52 = arith.constant 1 : index
    %c0_53 = arith.constant 0 : index
    %72 = vector.load %arg5[%c0_51, %c1_52, %c0_53] : memref<1x18x18xf32, #tpu.memory_space<vmem>>, vector<1x16x16xf32>
    %73 = vector.broadcast %71 : f32 to vector<1x16x16xf32>
    %74 = arith.mulf %73, %72 : vector<1x16x16xf32>
    %75 = arith.addf %70, %74 : vector<1x16x16xf32>
    %c13 = arith.constant 13 : index
    %76 = memref.load %arg1[%c13] : memref<18xf32, #tpu.memory_space<smem>>
    %c0_54 = arith.constant 0 : index
    %c1_55 = arith.constant 1 : index
    %c1_56 = arith.constant 1 : index
    %77 = vector.load %arg5[%c0_54, %c1_55, %c1_56] : memref<1x18x18xf32, #tpu.memory_space<vmem>>, vector<1x16x16xf32>
    %78 = vector.broadcast %76 : f32 to vector<1x16x16xf32>
    %79 = arith.mulf %78, %77 : vector<1x16x16xf32>
    %80 = arith.addf %75, %79 : vector<1x16x16xf32>
    %c14 = arith.constant 14 : index
    %81 = memref.load %arg1[%c14] : memref<18xf32, #tpu.memory_space<smem>>
    %c0_57 = arith.constant 0 : index
    %c1_58 = arith.constant 1 : index
    %c2_59 = arith.constant 2 : index
    %82 = vector.load %arg5[%c0_57, %c1_58, %c2_59] : memref<1x18x18xf32, #tpu.memory_space<vmem>>, vector<1x16x16xf32>
    %83 = vector.broadcast %81 : f32 to vector<1x16x16xf32>
    %84 = arith.mulf %83, %82 : vector<1x16x16xf32>
    %85 = arith.addf %80, %84 : vector<1x16x16xf32>
    %c15 = arith.constant 15 : index
    %86 = memref.load %arg1[%c15] : memref<18xf32, #tpu.memory_space<smem>>
    %c0_60 = arith.constant 0 : index
    %c2_61 = arith.constant 2 : index
    %c0_62 = arith.constant 0 : index
    %87 = vector.load %arg5[%c0_60, %c2_61, %c0_62] : memref<1x18x18xf32, #tpu.memory_space<vmem>>, vector<1x16x16xf32>
    %88 = vector.broadcast %86 : f32 to vector<1x16x16xf32>
    %89 = arith.mulf %88, %87 : vector<1x16x16xf32>
    %90 = arith.addf %85, %89 : vector<1x16x16xf32>
    %c16 = arith.constant 16 : index
    %91 = memref.load %arg1[%c16] : memref<18xf32, #tpu.memory_space<smem>>
    %c0_63 = arith.constant 0 : index
    %c2_64 = arith.constant 2 : index
    %c1_65 = arith.constant 1 : index
    %92 = vector.load %arg5[%c0_63, %c2_64, %c1_65] : memref<1x18x18xf32, #tpu.memory_space<vmem>>, vector<1x16x16xf32>
    %93 = vector.broadcast %91 : f32 to vector<1x16x16xf32>
    %94 = arith.mulf %93, %92 : vector<1x16x16xf32>
    %95 = arith.addf %90, %94 : vector<1x16x16xf32>
    %c17 = arith.constant 17 : index
    %96 = memref.load %arg1[%c17] : memref<18xf32, #tpu.memory_space<smem>>
    %c0_66 = arith.constant 0 : index
    %c2_67 = arith.constant 2 : index
    %c2_68 = arith.constant 2 : index
    %97 = vector.load %arg5[%c0_66, %c2_67, %c2_68] : memref<1x18x18xf32, #tpu.memory_space<vmem>>, vector<1x16x16xf32>
    %98 = vector.broadcast %96 : f32 to vector<1x16x16xf32>
    %99 = arith.mulf %98, %97 : vector<1x16x16xf32>
    %100 = arith.addf %95, %99 : vector<1x16x16xf32>
    %cst_69 = arith.constant 0.000000e+00 : f32
    %101 = vector.broadcast %cst_69 : f32 to vector<1x16x16xf32>
    %102 = arith.maximumf %100, %101 : vector<1x16x16xf32>
    %c0_70 = arith.constant 0 : index
    %c0_71 = arith.constant 0 : index
    %c0_72 = arith.constant 0 : index
    %103 = vector.load %arg4[%c0_70, %c0_71, %c0_72] : memref<1x16x16xf32, #tpu.memory_space<vmem>>, vector<1x16x16xf32>
    tpu.vector_store %arg4[%c0_70, %c0_71, %c0_72], %102 {strides = array<i32>} : memref<1x16x16xf32, #tpu.memory_space<vmem>>, vector<1x16x16xf32>,
    return
  }
  func.func @transform_0(%arg0: i32) -> i32 {
    %c0_i32 = arith.constant 0 : i32
    %c0_i32_0 = arith.constant 0 : i32
    return %c0_i32 : i32
  }
  func.func @transform_1(%arg0: i32) -> i32 {
    %c0_i32 = arith.constant 0 : i32
    %c0_i32_0 = arith.constant 0 : i32
    return %c0_i32 : i32
  }
  func.func @transform_2(%arg0: i32) -> (i32, i32, i32) {
    %c0_i32 = arith.constant 0 : i32
    %c0_i32_0 = arith.constant 0 : i32
    %c0_i32_1 = arith.constant 0 : i32
    return %arg0, %c0_i32, %c0_i32_0 : i32, i32, i32
  }
  func.func @transform_3(%arg0: i32) -> (i32, i32, i32) {
    %c0_i32 = arith.constant 0 : i32
    %c0_i32_0 = arith.constant 0 : i32
    %c0_i32_1 = arith.constant 0 : i32
    return %arg0, %c0_i32, %c0_i32_0 : i32, i32, i32
  }
}

</mosaic_0001>

<llo_original>
// kernel: neural_network_forward.1
$region0: #{neural_network_forward.1}
  #allocation0 [shape = 'u32[]', space=smem, size = 0x4, offset = 0x4, fixed_abs, tag = 'smem constant byte address 0x4 - core index']
  #allocation1 [shape = 'u32[144,128]{1,0:T(1,128)}', space=vmem, size = 0x12000, scoped, tag = 'internal scratch']
  #allocation2 [shape = 'f32[1,18,18]{2,1,0:T(8,128)}', space=vmem, size = 0x3000, scoped, tag = 'scratch operand']
  %s0 = inlined_call_operand.vmem [shape: f32[18], index: 0, kind: input, shape index: {}]
  %s1 = inlined_call_operand.vmem [shape: f32[2], index: 1, kind: input, shape index: {}]
  %s2 = inlined_call_operand.hbm [shape: f32[2,16,16], index: 2, kind: input, shape index: {}]
  %s3 = inlined_call_operand.hbm [shape: f32[2,16,16], index: 3, kind: output, shape index: {}]
  %s4 = sld [smem:[#allocation0]]
  $region57: #{neural_network_forward.1} parent=0
    _
  %s6 = ssub.s32 1, %s4
  %s7 = scalar_select 0, %s6, %s4
  $region1: #{neural_network_forward.1} parent=0
    #allocation3 [shape = 'u8[512]{0}', space=smem, size = 0x200, scoped, tag = 'input window, operand 0, single buffered']
    #allocation4 [shape = 's32[2]{0}', space=sflag, size = 0x8, scoped, tag = 'scoped memory for neural_network_forward.1']
    #allocation5 [shape = 's32[2]{0}', space=sflag, size = 0x8, scoped, tag = 'scoped memory for neural_network_forward.1']
    #allocation6 [shape = 's32[2]{0}', space=sflag, size = 0x8, scoped, tag = 'scoped memory for neural_network_forward.1']
    #allocation7 [shape = 'u8[512]{0}', space=smem, size = 0x200, scoped, tag = 'input window, operand 1, single buffered']
    #allocation8 [shape = 's32[1]{0}', space=sflag, size = 0x4, scoped, tag = 'scoped memory for neural_network_forward.1']
    #allocation9 [shape = 'u8[16384]{0}', space=vmem, size = 0x4000, scoped, tag = 'input window, operand 2']
    #allocation10 [shape = 'u8[16384]{0}', space=vmem, size = 0x4000, scoped, tag = 'output window, operand 0']
    %8 = vsyncpa [#allocation6], 0
    %9 = vsyncpa [#allocation8], 0
    %10 = vsyncpa [#allocation4], 0
    %s11 = scalar_lea.sflag [#allocation4], 1
    %12 = vsyncpa %s11, 0
    %13 = vsyncpa [#allocation5], 0
    %s14 = scalar_lea.sflag [#allocation5], 1
    %15 = vsyncpa %s14, 0
    loop: start=0, step=1, limit=4
    $region2: #{neural_network_forward.1} parent=1 // loop_pre_header
      _
    $region3: #{neural_network_forward.1} parent=1 // loop_header
      %s17 = sphi 0, %s21
      %p18 = scmp.ge.s32.totalorder %s17, 4
      %s25 = sphi 0, %s25
      %s27 = sphi 0, %s25
      %s28 = sphi 0, %s27
      %s42 = sphi 0, %s28
      %s46 = sphi 0, %s46
      %s48 = sphi 0, %s46
      %s49 = sphi 0, %s48
      %s63 = sphi 0, %s49
      %s69 = sphi 0, %s71
      %s72 = sphi 0, %s69
      %s73 = sphi 0, %s72
      %s89 = sphi 0, %s73
      %s95 = sphi 0, %s97
      %s98 = sphi 0, %s95
      %s99 = sphi 0, %s98
      %s115 = sphi 0, %s99
    $region4: #{neural_network_forward.1} parent=1 // loop_header_branch
      %20 = sbr.rel (%p18) target = $region8
    $region5: #{neural_network_forward.1} parent=1 // loop_body
      %s22 = ssub.s32 %s17, 1
      %s23 = ssub.s32 %s17, 2
      %s24 = sadd.s32 %s17, 1
      %s26 = sadd.s32 %s25, 1
      %p29 = scmp.eq.s32.totalorder %s17, 1
      %p30 = scmp.ne.s32.totalorder %s25, %s27
      %p31 = scmp.eq.s32.totalorder %s17, 0
      %p32 = por %p30, %p31
      %p33 = scmp.ne.s32.totalorder %s25, %s27
      %p34 = scmp.eq.s32.totalorder %s22, 1
      %p35 = por %p33, %p34
      %p36 = scmp.ne.s32.totalorder %s27, %s28
      %p37 = scmp.eq.s32.totalorder %s22, 0
      %p38 = por %p36, %p37
      %p39 = scmp.ne.s32.totalorder %s27, %s28
      %p40 = scmp.eq.s32.totalorder %s23, 1
      %p41 = por %p39, %p40
      %p43 = scmp.ne.s32.totalorder %s28, %s42
      %p44 = scmp.eq.s32.totalorder %s23, 0
      %p45 = por %p43, %p44
      %s47 = sadd.s32 %s46, 1
      %p50 = scmp.eq.s32.totalorder %s17, 1
      %p51 = scmp.ne.s32.totalorder %s46, %s48
      %p52 = scmp.eq.s32.totalorder %s17, 0
      %p53 = por %p51, %p52
      %p54 = scmp.ne.s32.totalorder %s46, %s48
      %p55 = scmp.eq.s32.totalorder %s22, 1
      %p56 = por %p54, %p55
      %p57 = scmp.ne.s32.totalorder %s48, %s49
      %p58 = scmp.eq.s32.totalorder %s22, 0
      %p59 = por %p57, %p58
      %p60 = scmp.ne.s32.totalorder %s48, %s49
      %p61 = scmp.eq.s32.totalorder %s23, 1
      %p62 = por %p60, %p61
      %p64 = scmp.ne.s32.totalorder %s49, %s63
      %p65 = scmp.eq.s32.totalorder %s23, 0
      %p66 = por %p64, %p65
      %s67 = ssub.s32 %s17, %s24
      %p68 = scmp.eq.s32.totalorder %s67, 0
      %s70 = sadd.s32 %s69, 1
      %s71 = scalar_select %p68, %s69, %s70
      %p74 = pneg %p68
      %p75 = scmp.eq.s32.totalorder %s17, 1
      %p76 = por %p74, %p75
      %p77 = scmp.ne.s32.totalorder %s69, %s72
      %p78 = scmp.eq.s32.totalorder %s17, 0
      %p79 = por %p77, %p78
      %p80 = scmp.ne.s32.totalorder %s69, %s72
      %p81 = scmp.eq.s32.totalorder %s22, 1
      %p82 = por %p80, %p81
      %p83 = scmp.ne.s32.totalorder %s72, %s73
      %p84 = scmp.eq.s32.totalorder %s22, 0
      %p85 = por %p83, %p84
      %p86 = scmp.ne.s32.totalorder %s72, %s73
      %p87 = scmp.eq.s32.totalorder %s23, 1
      %p88 = por %p86, %p87
      %p90 = scmp.ne.s32.totalorder %s73, %s89
      %p91 = scmp.eq.s32.totalorder %s23, 0
      %p92 = por %p90, %p91
      %s93 = ssub.s32 %s17, %s24
      %p94 = scmp.eq.s32.totalorder %s93, 0
      %s96 = sadd.s32 %s95, 1
      %s97 = scalar_select %p94, %s95, %s96
      %p100 = pneg %p94
      %p101 = scmp.eq.s32.totalorder %s17, 1
      %p102 = por %p100, %p101
      %p103 = scmp.ne.s32.totalorder %s95, %s98
      %p104 = scmp.eq.s32.totalorder %s17, 0
      %p105 = por %p103, %p104
      %p106 = scmp.ne.s32.totalorder %s95, %s98
      %p107 = scmp.eq.s32.totalorder %s22, 1
      %p108 = por %p106, %p107
      %p109 = scmp.ne.s32.totalorder %s98, %s99
      %p110 = scmp.eq.s32.totalorder %s22, 0
      %p111 = por %p109, %p110
      %p112 = scmp.ne.s32.totalorder %s98, %s99
      %p113 = scmp.eq.s32.totalorder %s23, 1
      %p114 = por %p112, %p113
      %p116 = scmp.ne.s32.totalorder %s99, %s115
      %p117 = scmp.eq.s32.totalorder %s23, 0
      %p118 = por %p116, %p117
      %p119 = scmp.le.s32.totalorder 1, %s17
      %p120 = scmp.lt.s32.totalorder %s17, 3
      %p121 = pnand %p119, %p120
      %p122 = pneg %p121
      // Predicated region
      $region9: #{neural_network_forward.1} parent=5 // pred_check
        _
      $region10: #{neural_network_forward.1} parent=5 // pred_check_branch
        %124 = sbr.rel (%p121) target = $region12
      $region11: #{neural_network_forward.1} parent=5 // pred_region
        %s125 = ssub.s32 %s17, 1
        // Predicated region
        $region13: #{neural_network_forward.1} parent=11 // pred_check
          %p126 = pneg %p38
        $region14: #{neural_network_forward.1} parent=11 // pred_check_branch
          %128 = sbr.rel (%p126) target = $region16
        $region15: #{neural_network_forward.1} parent=11 // pred_region
          %s130 = ssub.s32 16, 16
          %131 = vsyncadd [#allocation6], %s130
          %s133 = sshll.u32 %s0, 4
          %s134 = int_to_ptr.vmem [resolvable:$true] %s133
          %136 = dma.vmem_to_smem %s134, 16, [#allocation3], [#allocation6]
        $region16: #{neural_network_forward.1} parent=11 // pred_fallthru
          _
        // Predicated region
        $region17: #{neural_network_forward.1} parent=11 // pred_check
          %p137 = pneg %p59
        $region18: #{neural_network_forward.1} parent=11 // pred_check_branch
          %139 = sbr.rel (%p137) target = $region20
        $region19: #{neural_network_forward.1} parent=11 // pred_region
          %s141 = ssub.s32 16, 16
          %142 = vsyncadd [#allocation8], %s141
          %s144 = sshll.u32 %s1, 4
          %s145 = int_to_ptr.vmem [resolvable:$true] %s144
          %147 = dma.vmem_to_smem %s145, 16, [#allocation7], [#allocation8]
        $region20: #{neural_network_forward.1} parent=11 // pred_fallthru
          _
      $region12: #{neural_network_forward.1} parent=5 // pred_fallthru
        _
      %p148 = scmp.lt.s32.totalorder %s17, 2
      // Predicated region
      $region21: #{neural_network_forward.1} parent=5 // pred_check
        %p149 = pneg %p148
      $region22: #{neural_network_forward.1} parent=5 // pred_check_branch
        %151 = sbr.rel (%p149) target = $region24
      $region23: #{neural_network_forward.1} parent=5 // pred_region
        // Predicated region
        $region25: #{neural_network_forward.1} parent=23 // pred_check
          %p152 = pneg %p79
        $region26: #{neural_network_forward.1} parent=23 // pred_check_branch
          %154 = sbr.rel (%p152) target = $region28
        $region27: #{neural_network_forward.1} parent=23 // pred_region
          %s155 = sand.u32 %s69, 1
          %s156 = scalar_lea.sflag [#allocation4], %s155
          %s157 = sand.u32 %s69, 1
          %s158 = smul.addr %s157, 16
          %s159 = scalar_lea.vmem [#allocation9], %s158
          %s161 = ssub.s32 256, 256
          %162 = vsyncadd %s156, %s161
          %s163 = smul.addr %s17, 2
          %s164 = smul.addr %s163, 128
          %s165 = scalar_lea.hbm %s2, %s164
          %s166 = sshll.u32 %s159, 4
          %s167 = int_to_ptr.vmem [resolvable:$true] %s166
          %172 = dma.hbm_to_vmem [thread:$0]  %s165, 256, %s167, %s156, 128, 128, 8
        $region28: #{neural_network_forward.1} parent=23 // pred_fallthru
          _
      $region24: #{neural_network_forward.1} parent=5 // pred_fallthru
        _
      %p173 = scmp.le.s32.totalorder 1, %s17
      %p174 = scmp.lt.s32.totalorder %s17, 3
      %p175 = pnand %p173, %p174
      %p176 = pneg %p175
      // Predicated region
      $region29: #{neural_network_forward.1} parent=5 // pred_check
        _
      $region30: #{neural_network_forward.1} parent=5 // pred_check_branch
        %178 = sbr.rel (%p175) target = $region32
      $region31: #{neural_network_forward.1} parent=5 // pred_region
        %s179 = ssub.s32 %s17, 1
        // Predicated region
        $region33: #{neural_network_forward.1} parent=31 // pred_check
          %p180 = pneg %p38
        $region34: #{neural_network_forward.1} parent=31 // pred_check_branch
          %182 = sbr.rel (%p180) target = $region36
        $region35: #{neural_network_forward.1} parent=31 // pred_region
          %183 = dma.done [#allocation6], 16
        $region36: #{neural_network_forward.1} parent=31 // pred_fallthru
          _
        // Predicated region
        $region37: #{neural_network_forward.1} parent=31 // pred_check
          %p184 = pneg %p59
        $region38: #{neural_network_forward.1} parent=31 // pred_check_branch
          %186 = sbr.rel (%p184) target = $region40
        $region39: #{neural_network_forward.1} parent=31 // pred_region
          %187 = dma.done [#allocation8], 16
        $region40: #{neural_network_forward.1} parent=31 // pred_fallthru
          _
        %s188 = sand.u32 %s72, 1
        %s189 = scalar_lea.sflag [#allocation4], %s188
        %s190 = sand.u32 %s72, 1
        %s191 = smul.addr %s190, 16
        %s192 = scalar_lea.vmem [#allocation9], %s191
        // Predicated region
        $region41: #{neural_network_forward.1} parent=31 // pred_check
          %p193 = pneg %p85
        $region42: #{neural_network_forward.1} parent=31 // pred_check_branch
          %195 = sbr.rel (%p193) target = $region44
        $region43: #{neural_network_forward.1} parent=31 // pred_region
          %196 = dma.done %s189, 256
        $region44: #{neural_network_forward.1} parent=31 // pred_fallthru
          _
        %197 = sfence
        %p198 = pneg %p38
        %p199 = pneg %p35
        %p200 = pneg %p59
        %p201 = pneg %p56
        %s202 = sand.u32 %s72, 1
        %s203 = scalar_lea.sflag [#allocation4], %s202
        %s204 = sand.u32 %s72, 1
        %s205 = smul.addr %s204, 16
        %s206 = scalar_lea.vmem [#allocation9], %s205
        %p207 = pneg %p85
        %p208 = pneg %p82
        %p209 = pneg %p111
        %p210 = pneg %p108
        %s211 = sand.u32 %s98, 1
        %s212 = scalar_lea.sflag [#allocation5], %s211
        %s213 = sand.u32 %s98, 1
        %s214 = smul.addr %s213, 16
        %s215 = scalar_lea.vmem [#allocation10], %s214
        %vm216 = vcmask 146432
        %217 = vst.msk [vmem:[#allocation2] sm:$0xff] %vm216, 0.0
        %218 = vst.msk [vmem:[#allocation2 + $0x8] sm:$0xff] %vm216, 0.0
        %vm219 = vcmask 140288
        %220 = vst.msk [vmem:[#allocation2 + $0x10] sm:$0x3] %vm219, 0.0
        %v221 = vld [vmem:[%s192] sm:$0xff]
        %v222 = vld [vmem:[%s192 + $0x8] sm:$0xff]
        %225 = vrot.lane.b32.xlu0 %v221, 1
        %v226 = vpop.permute.xlu0 %225
        %227 = vrot.lane.b32.xlu0 %v222, 1
        %v228 = vpop.permute.xlu0 %227
        %vm231 = vcmask 138248
        %232 = vst.msk [vmem:[#allocation2 + $0x1] sm:$0xff] %vm231, %v226
        %233 = vst.msk [vmem:[#allocation2 + $0x9] sm:$0xff] %vm231, %v228
        %s234 = sld [smem:[#allocation7]]
        %v235 = vstv %s234
        %s236 = sld [smem:[#allocation3]]
        %v237 = vld [vmem:[#allocation2] sm:$0xff]
        %v238 = vld [vmem:[#allocation2 + $0x8] sm:$0xff]
        %v239 = vstv %s236
        %v240 = vmul.f32 %v239, %v237
        %v241 = vmul.f32 %v239, %v238
        %v242 = vadd.f32 %v235, %v240
        %v243 = vadd.f32 %v235, %v241
        %s244 = sld [smem:[#allocation3 + $0x1]]
        %v245 = vstv %s244
        %v246 = vmul.f32 %v245, %v237
        %v247 = vmul.f32 %v245, %v238
        %250 = vrot.lane.b32.xlu0 %v246, 127
        %v251 = vpop.permute.xlu0 %250
        %252 = vrot.lane.b32.xlu0 %v247, 127
        %v253 = vpop.permute.xlu0 %252
        %v256 = vadd.f32 %v242, %v251
        %v257 = vadd.f32 %v243, %v253
        %s258 = sld [smem:[#allocation3 + $0x2]]
        %v259 = vstv %s258
        %v260 = vmul.f32 %v259, %v237
        %v261 = vmul.f32 %v259, %v238
        %264 = vrot.lane.b32.xlu0 %v260, 126
        %v265 = vpop.permute.xlu0 %264
        %266 = vrot.lane.b32.xlu0 %v261, 126
        %v267 = vpop.permute.xlu0 %266
        %v270 = vadd.f32 %v256, %v265
        %v271 = vadd.f32 %v257, %v267
        %s272 = sld [smem:[#allocation3 + $0x3]]
        %v273 = vld [vmem:[#allocation2 + $0x1] sm:$0xff]
        %v274 = vld [vmem:[#allocation2 + $0x9] sm:$0xff]
        %v275 = vstv %s272
        %v276 = vmul.f32 %v275, %v273
        %v277 = vmul.f32 %v275, %v274
        %v278 = vadd.f32 %v270, %v276
        %v279 = vadd.f32 %v271, %v277
        %s280 = sld [smem:[#allocation3 + $0x4]]
        %v281 = vstv %s280
        %v282 = vmul.f32 %v281, %v273
        %v283 = vmul.f32 %v281, %v274
        %286 = vrot.lane.b32.xlu0 %v282, 127
        %v287 = vpop.permute.xlu0 %286
        %288 = vrot.lane.b32.xlu0 %v283, 127
        %v289 = vpop.permute.xlu0 %288
        %v292 = vadd.f32 %v278, %v287
        %v293 = vadd.f32 %v279, %v289
        %s294 = sld [smem:[#allocation3 + $0x5]]
        %v295 = vstv %s294
        %v296 = vmul.f32 %v295, %v273
        %v297 = vmul.f32 %v295, %v274
        %300 = vrot.lane.b32.xlu0 %v296, 126
        %v301 = vpop.permute.xlu0 %300
        %302 = vrot.lane.b32.xlu0 %v297, 126
        %v303 = vpop.permute.xlu0 %302
        %v306 = vadd.f32 %v292, %v301
        %v307 = vadd.f32 %v293, %v303
        %s308 = sld [smem:[#allocation3 + $0x6]]
        %v309 = vld [vmem:[#allocation2 + $0x2] sm:$0xff]
        %v310 = vld [vmem:[#allocation2 + $0xa] sm:$0xff]
        %v311 = vstv %s308
        %v312 = vmul.f32 %v311, %v309
        %v313 = vmul.f32 %v311, %v310
        %v314 = vadd.f32 %v306, %v312
        %v315 = vadd.f32 %v307, %v313
        %s316 = sld [smem:[#allocation3 + $0x7]]
        %v317 = vstv %s316
        %v318 = vmul.f32 %v317, %v309
        %v319 = vmul.f32 %v317, %v310
        %322 = vrot.lane.b32.xlu0 %v318, 127
        %v323 = vpop.permute.xlu0 %322
        %324 = vrot.lane.b32.xlu0 %v319, 127
        %v325 = vpop.permute.xlu0 %324
        %v328 = vadd.f32 %v314, %v323
        %v329 = vadd.f32 %v315, %v325
        %s330 = sld [smem:[#allocation3 + $0x8]]
        %v331 = vstv %s330
        %v332 = vmul.f32 %v331, %v309
        %v333 = vmul.f32 %v331, %v310
        %336 = vrot.lane.b32.xlu0 %v332, 126
        %v337 = vpop.permute.xlu0 %336
        %338 = vrot.lane.b32.xlu0 %v333, 126
        %v339 = vpop.permute.xlu0 %338
        %v342 = vadd.f32 %v328, %v337
        %v343 = vadd.f32 %v329, %v339
        %v344 = vmax.f32 %v342, 0.0
        %v345 = vmax.f32 %v343, 0.0
        %348 = vrot.lane.b32.xlu0 %v344, 1
        %v349 = vpop.permute.xlu0 %348
        %350 = vrot.lane.b32.xlu0 %v345, 1
        %v351 = vpop.permute.xlu0 %350
        %354 = vst.msk [vmem:[#allocation2 + $0x1] sm:$0xff] %vm231, %v349
        %355 = vst.msk [vmem:[#allocation2 + $0x9] sm:$0xff] %vm231, %v351
        %s356 = sld [smem:[#allocation7 + $0x1]]
        %v357 = vstv %s356
        %s358 = sld [smem:[#allocation3 + $0x9]]
        %v359 = vld [vmem:[#allocation2] sm:$0xff]
        %v360 = vld [vmem:[#allocation2 + $0x8] sm:$0xff]
        %v361 = vstv %s358
        %v362 = vmul.f32 %v361, %v359
        %v363 = vmul.f32 %v361, %v360
        %v364 = vadd.f32 %v357, %v362
        %v365 = vadd.f32 %v357, %v363
        %s366 = sld [smem:[#allocation3 + $0xa]]
        %v367 = vstv %s366
        %v368 = vmul.f32 %v367, %v359
        %v369 = vmul.f32 %v367, %v360
        %372 = vrot.lane.b32.xlu0 %v368, 127
        %v373 = vpop.permute.xlu0 %372
        %374 = vrot.lane.b32.xlu0 %v369, 127
        %v375 = vpop.permute.xlu0 %374
        %v378 = vadd.f32 %v364, %v373
        %v379 = vadd.f32 %v365, %v375
        %s380 = sld [smem:[#allocation3 + $0xb]]
        %v381 = vstv %s380
        %v382 = vmul.f32 %v381, %v359
        %v383 = vmul.f32 %v381, %v360
        %386 = vrot.lane.b32.xlu0 %v382, 126
        %v387 = vpop.permute.xlu0 %386
        %388 = vrot.lane.b32.xlu0 %v383, 126
        %v389 = vpop.permute.xlu0 %388
        %v392 = vadd.f32 %v378, %v387
        %v393 = vadd.f32 %v379, %v389
        %s394 = sld [smem:[#allocation3 + $0xc]]
        %v395 = vld [vmem:[#allocation2 + $0x1] sm:$0xff]
        %v396 = vld [vmem:[#allocation2 + $0x9] sm:$0xff]
        %v397 = vstv %s394
        %v398 = vmul.f32 %v397, %v395
        %v399 = vmul.f32 %v397, %v396
        %v400 = vadd.f32 %v392, %v398
        %v401 = vadd.f32 %v393, %v399
        %s402 = sld [smem:[#allocation3 + $0xd]]
        %v403 = vstv %s402
        %v404 = vmul.f32 %v403, %v395
        %v405 = vmul.f32 %v403, %v396
        %408 = vrot.lane.b32.xlu0 %v404, 127
        %v409 = vpop.permute.xlu0 %408
        %410 = vrot.lane.b32.xlu0 %v405, 127
        %v411 = vpop.permute.xlu0 %410
        %v414 = vadd.f32 %v400, %v409
        %v415 = vadd.f32 %v401, %v411
        %s416 = sld [smem:[#allocation3 + $0xe]]
        %v417 = vstv %s416
        %v418 = vmul.f32 %v417, %v395
        %v419 = vmul.f32 %v417, %v396
        %422 = vrot.lane.b32.xlu0 %v418, 126
        %v423 = vpop.permute.xlu0 %422
        %424 = vrot.lane.b32.xlu0 %v419, 126
        %v425 = vpop.permute.xlu0 %424
        %v428 = vadd.f32 %v414, %v423
        %v429 = vadd.f32 %v415, %v425
        %s430 = sld [smem:[#allocation3 + $0xf]]
        %v431 = vld [vmem:[#allocation2 + $0x2] sm:$0xff]
        %v432 = vld [vmem:[#allocation2 + $0xa] sm:$0xff]
        %v433 = vstv %s430
        %v434 = vmul.f32 %v433, %v431
        %v435 = vmul.f32 %v433, %v432
        %v436 = vadd.f32 %v428, %v434
        %v437 = vadd.f32 %v429, %v435
        %s438 = sld [smem:[#allocation3 + $0x10]]
        %v439 = vstv %s438
        %v440 = vmul.f32 %v439, %v431
        %v441 = vmul.f32 %v439, %v432
        %444 = vrot.lane.b32.xlu0 %v440, 127
        %v445 = vpop.permute.xlu0 %444
        %446 = vrot.lane.b32.xlu0 %v441, 127
        %v447 = vpop.permute.xlu0 %446
        %v450 = vadd.f32 %v436, %v445
        %v451 = vadd.f32 %v437, %v447
        %s452 = sld [smem:[#allocation3 + $0x11]]
        %v453 = vstv %s452
        %v454 = vmul.f32 %v453, %v431
        %v455 = vmul.f32 %v453, %v432
        %458 = vrot.lane.b32.xlu0 %v454, 126
        %v459 = vpop.permute.xlu0 %458
        %460 = vrot.lane.b32.xlu0 %v455, 126
        %v461 = vpop.permute.xlu0 %460
        %v464 = vadd.f32 %v450, %v459
        %v465 = vadd.f32 %v451, %v461
        %v466 = vmax.f32 %v464, 0.0
        %v467 = vmax.f32 %v465, 0.0
        %vm468 = vcmask 130048
        %469 = vst.msk [vmem:[%s215] sm:$0xff] %vm468, %v466
        %470 = vst.msk [vmem:[%s215 + $0x8] sm:$0xff] %vm468, %v467
        %s471 = sand.u32 %s98, 1
        %s472 = scalar_lea.sflag [#allocation5], %s471
        %s473 = sand.u32 %s98, 1
        %s474 = smul.addr %s473, 16
        %s475 = scalar_lea.vmem [#allocation10], %s474
        // Predicated region
        $region45: #{neural_network_forward.1} parent=31 // pred_check
          %p476 = pneg %p108
        $region46: #{neural_network_forward.1} parent=31 // pred_check_branch
          %478 = sbr.rel (%p476) target = $region48
        $region47: #{neural_network_forward.1} parent=31 // pred_region
          %s480 = ssub.s32 256, 256
          %481 = vsyncadd %s472, %s480
          %s482 = smul.addr %s22, 2
          %s483 = smul.addr %s482, 128
          %s484 = scalar_lea.hbm %s3, %s483
          %s485 = sshll.u32 %s475, 4
          %s486 = int_to_ptr.vmem [resolvable:$true] %s485
          %491 = dma.vmem_to_hbm [thread:$0]  %s486, 256, %s484, %s472, 128, 128, 8
        $region48: #{neural_network_forward.1} parent=31 // pred_fallthru
          _
      $region32: #{neural_network_forward.1} parent=5 // pred_fallthru
        _
      %p492 = scmp.le.s32.totalorder 2, %s17
      // Predicated region
      $region49: #{neural_network_forward.1} parent=5 // pred_check
        %p493 = pneg %p492
      $region50: #{neural_network_forward.1} parent=5 // pred_check_branch
        %495 = sbr.rel (%p493) target = $region52
      $region51: #{neural_network_forward.1} parent=5 // pred_region
        %s496 = ssub.s32 %s17, 2
        // Predicated region
        $region53: #{neural_network_forward.1} parent=51 // pred_check
          %p497 = pneg %p114
        $region54: #{neural_network_forward.1} parent=51 // pred_check_branch
          %499 = sbr.rel (%p497) target = $region56
        $region55: #{neural_network_forward.1} parent=51 // pred_region
          %s500 = sand.u32 %s99, 1
          %s501 = scalar_lea.sflag [#allocation5], %s500
          %s502 = sand.u32 %s99, 1
          %s503 = smul.addr %s502, 16
          %s504 = scalar_lea.vmem [#allocation10], %s503
          %505 = dma.done %s501, 256
        $region56: #{neural_network_forward.1} parent=51 // pred_fallthru
          _
      $region52: #{neural_network_forward.1} parent=5 // pred_fallthru
        _
    $region6: #{neural_network_forward.1} parent=1 // loop_footer
      %s21 = sadd.s32 1, %s17
    $region7: #{neural_network_forward.1} parent=1 // loop_footer_branch
      %16 = sbr.rel target = $region3
    $region8: #{neural_network_forward.1} parent=1 // loop_exit
      _
    %506 = vsyncpa [#allocation4], 1
    %s507 = scalar_lea.sflag [#allocation4], 1
    %508 = vsyncpa %s507, 1
    %509 = vsyncpa [#allocation5], 1
    %s510 = scalar_lea.sflag [#allocation5], 1
    %511 = vsyncpa %s510, 1
    %512 = vsyncpa [#allocation6], 1
    %s513 = scalar_lea.sflag [#allocation6], 1
    %514 = vsyncpa %s513, 1
    %515 = vsyncpa [#allocation8], 1

</llo_original>
